<compile_context>
chip_gen: v5e
topology: v5e:2x2
jax: 0.10.0
libtpu: 0.0.40
codegen_flags: <defaults>
</compile_context>

<pallas_src>
import jax
import jax.numpy as jnp
from jax.experimental import pallas as pl
from jax.experimental.pallas import tpu as pltpu

_LANES = 128
_SUBLANES = 8
_MAX_TILE_ROWS = 512  # 512*128 f32 tile = 256 KiB; x1+x2+out double-buffered ~2 MiB


def _attack_threshold_kernel(thr_ref, x1_ref, x2_ref, out_ref):
    # thr_ref: (C,) f32 in SMEM (scalar reads)
    # x1_ref:  (tile_rows, 128) f32  scores
    # x2_ref:  (tile_rows, 128) i32  class ids
    # out_ref: (2, tile_rows, 128) i32 one-hot planes
    C = thr_ref.shape[0]

    x1 = x1_ref[...]
    x2 = x2_ref[...]

    # Gather threshold[x2] via an unrolled compare+select chain (pure VPU,
    # scalar broadcasts from SMEM). Out-of-range ids fall through to 0.0.
    g = jnp.zeros_like(x1)
    for c in range(C):
        g = jnp.where(x2 == c, thr_ref[c], g)

    # lt = (x1 < threshold[x2]) as {0,1}
    lt = (x1 < g).astype(jnp.int32)          # (tile_rows, 128)

    # one_hot(lt) with 2 classes, written lane-dense (one plane per class).
    # TODO(synk): F.one_hot infers num_classes = max(lt)+1 (data dependent);
    # here it is fixed to 2, which matches the intended two-class output.
    out_ref[0, :, :] = 1 - lt
    out_ref[1, :, :] = lt


def attack_net_threshold_pc(x, threshold):
    """x: (B, 2) float; threshold: (C,) float -> (B, 2) int32 one-hot."""
    B = x.shape[0]
    threshold = threshold.astype(jnp.float32)
    x = x.astype(jnp.float32)

    # Split features in the wrapper: scores stay f32, class ids become int32
    # (removes the in-kernel f32->i32 convert and any representability issue).
    x1 = x[:, 0]
    x2 = x[:, 1].astype(jnp.int32)

    # Pad B and lay the batch out lane-dense as (rows, 128).
    rows = -(-B // _LANES)                                   # ceil(B / 128)
    rows = -(-rows // _SUBLANES) * _SUBLANES                 # multiple of 8
    tile_rows = min(_MAX_TILE_ROWS, rows)
    rows = -(-rows // tile_rows) * tile_rows                 # multiple of tile
    b_pad = rows * _LANES

    x1p = jnp.pad(x1, (0, b_pad - B)).reshape(rows, _LANES)
    x2p = jnp.pad(x2, (0, b_pad - B)).reshape(rows, _LANES)

    grid = (rows // tile_rows,)

    out3 = pl.pallas_call(
        _attack_threshold_kernel,
        out_shape=jax.ShapeDtypeStruct((2, rows, _LANES), jnp.int32),
        grid=grid,
        in_specs=[
            # Small per-class threshold table lives in SMEM.
            pl.BlockSpec(memory_space=pltpu.MemorySpace.SMEM),
            pl.BlockSpec((tile_rows, _LANES), lambda i: (i, 0)),
            pl.BlockSpec((tile_rows, _LANES), lambda i: (i, 0)),
        ],
        out_specs=pl.BlockSpec((2, tile_rows, _LANES), lambda i: (0, i, 0)),
        compiler_params=pltpu.CompilerParams(
            dimension_semantics=("parallel",)),
    )(threshold, x1p, x2p)

    # (2, rows, 128) -> (2, B) -> (B, 2); padded rows are sliced away.
    out = out3.reshape(2, b_pad)[:, :B].T
    return out


def _reference(x, threshold):
    x1 = x[:, 0].astype(jnp.float32)
    x2 = x[:, 1].astype(jnp.int32)
    lt = (x1 < threshold[x2]).astype(jnp.int32)
    return jax.nn.one_hot(lt, 2, dtype=jnp.int32)


if __name__ == "__main__":
    key = jax.random.PRNGKey(0)
    k1, k2, k3, k4 = jax.random.split(key, 4)

    # Case 1: tiny batch.
    B, C = 8, 16
    threshold = jnp.linspace(0.1, 0.9, C, dtype=jnp.float32)
    scores = jax.random.uniform(k1, (B,), dtype=jnp.float32)
    class_ids = jax.random.randint(k2, (B,), 0, C).astype(jnp.float32)
    x = jnp.stack([scores, class_ids], axis=1)               # (B, 2)

    out = attack_net_threshold_pc(x, threshold)
    out = jax.block_until_ready(out)
    assert out.shape == (B, 2)
    assert jnp.array_equal(out, _reference(x, threshold))

    # Case 2: batch crossing a lane boundary (exercises padding path).
    B2, C2 = 300, 10
    threshold2 = jnp.linspace(0.05, 0.95, C2, dtype=jnp.float32)
    scores2 = jax.random.uniform(k3, (B2,), dtype=jnp.float32)
    class_ids2 = jax.random.randint(k4, (B2,), 0, C2).astype(jnp.float32)
    x2in = jnp.stack([scores2, class_ids2], axis=1)          # (B2, 2)

    out2 = attack_net_threshold_pc(x2in, threshold2)
    out2 = jax.block_until_ready(out2)
    assert out2.shape == (B2, 2)
    assert jnp.array_equal(out2, _reference(x2in, threshold2))

    print("KERNEL_OK")
</pallas_src>

<mosaic_0001>
module attributes {stable_mosaic.version = 11 : i64} {
  func.func @_attack_threshold_kernel(%arg0: i32, %arg1: memref<16xf32, #tpu.memory_space<smem>>, %arg2: memref<8x128xf32, #tpu.memory_space<vmem>>, %arg3: memref<8x128xi32, #tpu.memory_space<vmem>>, %arg4: memref<2x8x128xi32, #tpu.memory_space<vmem>>) attributes {dimension_semantics = [#tpu.dimension_semantics<parallel>], iteration_bounds = array<i64: 1>, scalar_prefetch = 0 : i64, scratch_operands = 0 : i64, tpu.core_type = #tpu.core_type<tc>, window_params = [{transform_indices = @transform_0, window_bounds = array<i64: 16>}, {transform_indices = @transform_1, window_bounds = array<i64: 8, 128>}, {transform_indices = @transform_2, window_bounds = array<i64: 8, 128>}, {transform_indices = @transform_3, window_bounds = array<i64: 2, 8, 128>}]} {
    %c0 = arith.constant 0 : index
    %c0_0 = arith.constant 0 : index
    %0 = vector.load %arg2[%c0, %c0_0] : memref<8x128xf32, #tpu.memory_space<vmem>>, vector<8x128xf32>
    %c0_1 = arith.constant 0 : index
    %c0_2 = arith.constant 0 : index
    %1 = vector.load %arg3[%c0_1, %c0_2] : memref<8x128xi32, #tpu.memory_space<vmem>>, vector<8x128xi32>
    %cst = arith.constant 0.000000e+00 : f32
    %2 = vector.broadcast %cst : f32 to vector<8x128xf32>
    %c0_i32 = arith.constant 0 : i32
    %3 = vector.broadcast %c0_i32 : i32 to vector<8x128xi32>
    %4 = arith.cmpi eq, %1, %3 : vector<8x128xi32>
    %c0_3 = arith.constant 0 : index
    %5 = memref.load %arg1[%c0_3] : memref<16xf32, #tpu.memory_space<smem>>
    %6 = vector.broadcast %5 : f32 to vector<8x128xf32>
    %7 = arith.select %4, %6, %2 : vector<8x128xi1>, vector<8x128xf32>
    %c1_i32 = arith.constant 1 : i32
    %8 = vector.broadcast %c1_i32 : i32 to vector<8x128xi32>
    %9 = arith.cmpi eq, %1, %8 : vector<8x128xi32>
    %c1 = arith.constant 1 : index
    %10 = memref.load %arg1[%c1] : memref<16xf32, #tpu.memory_space<smem>>
    %11 = vector.broadcast %10 : f32 to vector<8x128xf32>
    %12 = arith.select %9, %11, %7 : vector<8x128xi1>, vector<8x128xf32>
    %c2_i32 = arith.constant 2 : i32
    %13 = vector.broadcast %c2_i32 : i32 to vector<8x128xi32>
    %14 = arith.cmpi eq, %1, %13 : vector<8x128xi32>
    %c2 = arith.constant 2 : index
    %15 = memref.load %arg1[%c2] : memref<16xf32, #tpu.memory_space<smem>>
    %16 = vector.broadcast %15 : f32 to vector<8x128xf32>
    %17 = arith.select %14, %16, %12 : vector<8x128xi1>, vector<8x128xf32>
    %c3_i32 = arith.constant 3 : i32
    %18 = vector.broadcast %c3_i32 : i32 to vector<8x128xi32>
    %19 = arith.cmpi eq, %1, %18 : vector<8x128xi32>
    %c3 = arith.constant 3 : index
    %20 = memref.load %arg1[%c3] : memref<16xf32, #tpu.memory_space<smem>>
    %21 = vector.broadcast %20 : f32 to vector<8x128xf32>
    %22 = arith.select %19, %21, %17 : vector<8x128xi1>, vector<8x128xf32>
    %c4_i32 = arith.constant 4 : i32
    %23 = vector.broadcast %c4_i32 : i32 to vector<8x128xi32>
    %24 = arith.cmpi eq, %1, %23 : vector<8x128xi32>
    %c4 = arith.constant 4 : index
    %25 = memref.load %arg1[%c4] : memref<16xf32, #tpu.memory_space<smem>>
    %26 = vector.broadcast %25 : f32 to vector<8x128xf32>
    %27 = arith.select %24, %26, %22 : vector<8x128xi1>, vector<8x128xf32>
    %c5_i32 = arith.constant 5 : i32
    %28 = vector.broadcast %c5_i32 : i32 to vector<8x128xi32>
    %29 = arith.cmpi eq, %1, %28 : vector<8x128xi32>
    %c5 = arith.constant 5 : index
    %30 = memref.load %arg1[%c5] : memref<16xf32, #tpu.memory_space<smem>>
    %31 = vector.broadcast %30 : f32 to vector<8x128xf32>
    %32 = arith.select %29, %31, %27 : vector<8x128xi1>, vector<8x128xf32>
    %c6_i32 = arith.constant 6 : i32
    %33 = vector.broadcast %c6_i32 : i32 to vector<8x128xi32>
    %34 = arith.cmpi eq, %1, %33 : vector<8x128xi32>
    %c6 = arith.constant 6 : index
    %35 = memref.load %arg1[%c6] : memref<16xf32, #tpu.memory_space<smem>>
    %36 = vector.broadcast %35 : f32 to vector<8x128xf32>
    %37 = arith.select %34, %36, %32 : vector<8x128xi1>, vector<8x128xf32>
    %c7_i32 = arith.constant 7 : i32
    %38 = vector.broadcast %c7_i32 : i32 to vector<8x128xi32>
    %39 = arith.cmpi eq, %1, %38 : vector<8x128xi32>
    %c7 = arith.constant 7 : index
    %40 = memref.load %arg1[%c7] : memref<16xf32, #tpu.memory_space<smem>>
    %41 = vector.broadcast %40 : f32 to vector<8x128xf32>
    %42 = arith.select %39, %41, %37 : vector<8x128xi1>, vector<8x128xf32>
    %c8_i32 = arith.constant 8 : i32
    %43 = vector.broadcast %c8_i32 : i32 to vector<8x128xi32>
    %44 = arith.cmpi eq, %1, %43 : vector<8x128xi32>
    %c8 = arith.constant 8 : index
    %45 = memref.load %arg1[%c8] : memref<16xf32, #tpu.memory_space<smem>>
    %46 = vector.broadcast %45 : f32 to vector<8x128xf32>
    %47 = arith.select %44, %46, %42 : vector<8x128xi1>, vector<8x128xf32>
    %c9_i32 = arith.constant 9 : i32
    %48 = vector.broadcast %c9_i32 : i32 to vector<8x128xi32>
    %49 = arith.cmpi eq, %1, %48 : vector<8x128xi32>
    %c9 = arith.constant 9 : index
    %50 = memref.load %arg1[%c9] : memref<16xf32, #tpu.memory_space<smem>>
    %51 = vector.broadcast %50 : f32 to vector<8x128xf32>
    %52 = arith.select %49, %51, %47 : vector<8x128xi1>, vector<8x128xf32>
    %c10_i32 = arith.constant 10 : i32
    %53 = vector.broadcast %c10_i32 : i32 to vector<8x128xi32>
    %54 = arith.cmpi eq, %1, %53 : vector<8x128xi32>
    %c10 = arith.constant 10 : index
    %55 = memref.load %arg1[%c10] : memref<16xf32, #tpu.memory_space<smem>>
    %56 = vector.broadcast %55 : f32 to vector<8x128xf32>
    %57 = arith.select %54, %56, %52 : vector<8x128xi1>, vector<8x128xf32>
    %c11_i32 = arith.constant 11 : i32
    %58 = vector.broadcast %c11_i32 : i32 to vector<8x128xi32>
    %59 = arith.cmpi eq, %1, %58 : vector<8x128xi32>
    %c11 = arith.constant 11 : index
    %60 = memref.load %arg1[%c11] : memref<16xf32, #tpu.memory_space<smem>>
    %61 = vector.broadcast %60 : f32 to vector<8x128xf32>
    %62 = arith.select %59, %61, %57 : vector<8x128xi1>, vector<8x128xf32>
    %c12_i32 = arith.constant 12 : i32
    %63 = vector.broadcast %c12_i32 : i32 to vector<8x128xi32>
    %64 = arith.cmpi eq, %1, %63 : vector<8x128xi32>
    %c12 = arith.constant 12 : index
    %65 = memref.load %arg1[%c12] : memref<16xf32, #tpu.memory_space<smem>>
    %66 = vector.broadcast %65 : f32 to vector<8x128xf32>
    %67 = arith.select %64, %66, %62 : vector<8x128xi1>, vector<8x128xf32>
    %c13_i32 = arith.constant 13 : i32
    %68 = vector.broadcast %c13_i32 : i32 to vector<8x128xi32>
    %69 = arith.cmpi eq, %1, %68 : vector<8x128xi32>
    %c13 = arith.constant 13 : index
    %70 = memref.load %arg1[%c13] : memref<16xf32, #tpu.memory_space<smem>>
    %71 = vector.broadcast %70 : f32 to vector<8x128xf32>
    %72 = arith.select %69, %71, %67 : vector<8x128xi1>, vector<8x128xf32>
    %c14_i32 = arith.constant 14 : i32
    %73 = vector.broadcast %c14_i32 : i32 to vector<8x128xi32>
    %74 = arith.cmpi eq, %1, %73 : vector<8x128xi32>
    %c14 = arith.constant 14 : index
    %75 = memref.load %arg1[%c14] : memref<16xf32, #tpu.memory_space<smem>>
    %76 = vector.broadcast %75 : f32 to vector<8x128xf32>
    %77 = arith.select %74, %76, %72 : vector<8x128xi1>, vector<8x128xf32>
    %c15_i32 = arith.constant 15 : i32
    %78 = vector.broadcast %c15_i32 : i32 to vector<8x128xi32>
    %79 = arith.cmpi eq, %1, %78 : vector<8x128xi32>
    %c15 = arith.constant 15 : index
    %80 = memref.load %arg1[%c15] : memref<16xf32, #tpu.memory_space<smem>>
    %81 = vector.broadcast %80 : f32 to vector<8x128xf32>
    %82 = arith.select %79, %81, %77 : vector<8x128xi1>, vector<8x128xf32>
    %83 = arith.cmpf olt, %0, %82 : vector<8x128xf32>
    %84 = arith.extui %83 : vector<8x128xi1> to vector<8x128xi32>
    %c1_i32_4 = arith.constant 1 : i32
    %85 = vector.broadcast %c1_i32_4 : i32 to vector<8x128xi32>
    %86 = arith.subi %85, %84 : vector<8x128xi32>
    %c0_5 = arith.constant 0 : index
    %c0_6 = arith.constant 0 : index
    %c0_7 = arith.constant 0 : index
    %87 = vector.load %arg4[%c0_5, %c0_6, %c0_7] : memref<2x8x128xi32, #tpu.memory_space<vmem>>, vector<1x8x128xi32>
    %88 = vector.shape_cast %87 : vector<1x8x128xi32> to vector<8x128xi32>
    %89 = vector.shape_cast %86 : vector<8x128xi32> to vector<1x8x128xi32>
    tpu.vector_store %arg4[%c0_5, %c0_6, %c0_7], %89 {strides = array<i32>} : memref<2x8x128xi32, #tpu.memory_space<vmem>>, vector<1x8x128xi32>,
    %c1_8 = arith.constant 1 : index
    %c0_9 = arith.constant 0 : index
    %c0_10 = arith.constant 0 : index
    %90 = vector.load %arg4[%c1_8, %c0_9, %c0_10] : memref<2x8x128xi32, #tpu.memory_space<vmem>>, vector<1x8x128xi32>
    %91 = vector.shape_cast %90 : vector<1x8x128xi32> to vector<8x128xi32>
    %92 = vector.shape_cast %84 : vector<8x128xi32> to vector<1x8x128xi32>
    tpu.vector_store %arg4[%c1_8, %c0_9, %c0_10], %92 {strides = array<i32>} : memref<2x8x128xi32, #tpu.memory_space<vmem>>, vector<1x8x128xi32>,
    return
  }
  func.func @transform_0(%arg0: i32) -> i32 {
    %c0_i32 = arith.constant 0 : i32
    %c0_i32_0 = arith.constant 0 : i32
    return %c0_i32 : i32
  }
  func.func @transform_1(%arg0: i32) -> (i32, i32) {
    %c0_i32 = arith.constant 0 : i32
    %c0_i32_0 = arith.constant 0 : i32
    return %arg0, %c0_i32 : i32, i32
  }
  func.func @transform_2(%arg0: i32) -> (i32, i32) {
    %c0_i32 = arith.constant 0 : i32
    %c0_i32_0 = arith.constant 0 : i32
    return %arg0, %c0_i32 : i32, i32
  }
  func.func @transform_3(%arg0: i32) -> (i32, i32, i32) {
    %c0_i32 = arith.constant 0 : i32
    %c0_i32_0 = arith.constant 0 : i32
    %c0_i32_1 = arith.constant 0 : i32
    return %c0_i32, %arg0, %c0_i32_0 : i32, i32, i32
  }
}

</mosaic_0001>

<llo_original>
// kernel: tpu_custom_call.1
$region0: #{tpu_custom_call.1}
  #allocation0 [shape = 'u32[]', space=smem, size = 0x4, offset = 0x4, fixed_abs, tag = 'smem constant byte address 0x4 - core index']
  #allocation1 [shape = 'u32[72,128]{1,0:T(1,128)}', space=vmem, size = 0x9000, scoped, tag = 'internal scratch']
  %s0 = inlined_call_operand.hbm [shape: f32[16], index: 0, kind: input, shape index: {}]
  %s1 = inlined_call_operand.hbm [shape: f32[8,128], index: 1, kind: input, shape index: {}]
  %s2 = inlined_call_operand.hbm [shape: s32[8,128], index: 2, kind: input, shape index: {}]
  %s3 = inlined_call_operand.hbm [shape: s32[2,8,128], index: 3, kind: output, shape index: {}]
  %s4 = sld [smem:[#allocation0]]
  $region34: #{tpu_custom_call.1} parent=0
    _
  %s6 = ssub.s32 1, %s4
  %s7 = scalar_select 0, %s6, %s4
  $region1: #{tpu_custom_call.1} parent=0
    #allocation2 [shape = 'u8[512]{0}', space=smem, size = 0x200, scoped, tag = 'input window, operand 0, single buffered']
    #allocation3 [shape = 's32[1]{0}', space=sflag, size = 0x4, scoped, tag = 'scoped memory for tpu_custom_call.1']
    #allocation4 [shape = 's32[1]{0}', space=sflag, size = 0x4, scoped, tag = 'scoped memory for tpu_custom_call.1']
    #allocation5 [shape = 's32[1]{0}', space=sflag, size = 0x4, scoped, tag = 'scoped memory for tpu_custom_call.1']
    #allocation6 [shape = 'u8[4096]{0}', space=vmem, size = 0x1000, scoped, tag = 'input window, operand 1, single buffered']
    #allocation7 [shape = 'u8[4096]{0}', space=vmem, size = 0x1000, scoped, tag = 'input window, operand 2, single buffered']
    #allocation8 [shape = 's32[1]{0}', space=sflag, size = 0x4, scoped, tag = 'scoped memory for tpu_custom_call.1']
    #allocation9 [shape = 'u8[8192]{0}', space=vmem, size = 0x2000, scoped, tag = 'output window, operand 0, single buffered']
    %8 = vsyncpa [#allocation5], 0
    %9 = vsyncpa [#allocation3], 0
    %10 = vsyncpa [#allocation8], 0
    %11 = vsyncpa [#allocation4], 0
    // Predicated region
    $region2: #{tpu_custom_call.1} parent=1 // pred_check
      _
    $region3: #{tpu_custom_call.1} parent=1 // pred_check_branch
      %13 = sbr.rel (0) target = $region5
    $region4: #{tpu_custom_call.1} parent=1 // pred_region
      %15 = vsyncadd [#allocation5], 0
      %s17 = sshll.u32 %s0, 4
      %s18 = int_to_ptr.hbm [resolvable:$true] %s17
      %20 = dma.hbm_to_smem %s18, 16, [#allocation2], [#allocation5]
    $region5: #{tpu_custom_call.1} parent=1 // pred_fallthru
      _
    // Predicated region
    $region6: #{tpu_custom_call.1} parent=1 // pred_check
      _
    $region7: #{tpu_custom_call.1} parent=1 // pred_check_branch
      %22 = sbr.rel (0) target = $region9
    $region8: #{tpu_custom_call.1} parent=1 // pred_region
      %24 = vsyncadd [#allocation3], 0
      %s26 = sshll.u32 %s1, 4
      %s27 = int_to_ptr.hbm [resolvable:$true] %s26
      %s28 = sshll.u32 [#allocation6], 4
      %s29 = int_to_ptr.vmem [resolvable:$true] %s28
      %31 = dma.hbm_to_vmem [thread:$0]  %s27, 128, %s29, [#allocation3]
    $region9: #{tpu_custom_call.1} parent=1 // pred_fallthru
      _
    // Predicated region
    $region10: #{tpu_custom_call.1} parent=1 // pred_check
      _
    $region11: #{tpu_custom_call.1} parent=1 // pred_check_branch
      %33 = sbr.rel (0) target = $region13
    $region12: #{tpu_custom_call.1} parent=1 // pred_region
      %35 = vsyncadd [#allocation8], 0
      %s37 = sshll.u32 %s2, 4
      %s38 = int_to_ptr.hbm [resolvable:$true] %s37
      %s39 = sshll.u32 [#allocation7], 4
      %s40 = int_to_ptr.vmem [resolvable:$true] %s39
      %42 = dma.hbm_to_vmem [thread:$0]  %s38, 128, %s40, [#allocation8]
    $region13: #{tpu_custom_call.1} parent=1 // pred_fallthru
      _
    // Predicated region
    $region14: #{tpu_custom_call.1} parent=1 // pred_check
      _
    $region15: #{tpu_custom_call.1} parent=1 // pred_check_branch
      %44 = sbr.rel (0) target = $region17
    $region16: #{tpu_custom_call.1} parent=1 // pred_region
      %46 = dma.done [#allocation5], 16
    $region17: #{tpu_custom_call.1} parent=1 // pred_fallthru
      _
    // Predicated region
    $region18: #{tpu_custom_call.1} parent=1 // pred_check
      _
    $region19: #{tpu_custom_call.1} parent=1 // pred_check_branch
      %48 = sbr.rel (0) target = $region21
    $region20: #{tpu_custom_call.1} parent=1 // pred_region
      %50 = dma.done [#allocation3], 128
    $region21: #{tpu_custom_call.1} parent=1 // pred_fallthru
      _
    // Predicated region
    $region22: #{tpu_custom_call.1} parent=1 // pred_check
      _
    $region23: #{tpu_custom_call.1} parent=1 // pred_check_branch
      %52 = sbr.rel (0) target = $region25
    $region24: #{tpu_custom_call.1} parent=1 // pred_region
      %54 = dma.done [#allocation8], 128
    $region25: #{tpu_custom_call.1} parent=1 // pred_fallthru
      _
    %55 = sfence
    %v56 = vld [vmem:[#allocation6] sm:$0xff]
    %v57 = vld [vmem:[#allocation7] sm:$0xff]
    %vm58 = vcmp.eq.s32.totalorder %v57, 0
    %s59 = sld [smem:[#allocation2]]
    %v60 = vstv %s59
    %v61 = vsel %vm58, %v60, 0.0
    %vm62 = vcmp.eq.s32.totalorder %v57, 1
    %s63 = sld [smem:[#allocation2 + $0x1]]
    %v64 = vstv %s63
    %v65 = vsel %vm62, %v64, %v61
    %vm66 = vcmp.eq.s32.totalorder %v57, 2
    %s67 = sld [smem:[#allocation2 + $0x2]]
    %v68 = vstv %s67
    %v69 = vsel %vm66, %v68, %v65
    %vm70 = vcmp.eq.s32.totalorder %v57, 3
    %s71 = sld [smem:[#allocation2 + $0x3]]
    %v72 = vstv %s71
    %v73 = vsel %vm70, %v72, %v69
    %vm74 = vcmp.eq.s32.totalorder %v57, 4
    %s75 = sld [smem:[#allocation2 + $0x4]]
    %v76 = vstv %s75
    %v77 = vsel %vm74, %v76, %v73
    %vm78 = vcmp.eq.s32.totalorder %v57, 5
    %s79 = sld [smem:[#allocation2 + $0x5]]
    %v80 = vstv %s79
    %v81 = vsel %vm78, %v80, %v77
    %vm82 = vcmp.eq.s32.totalorder %v57, 6
    %s83 = sld [smem:[#allocation2 + $0x6]]
    %v84 = vstv %s83
    %v85 = vsel %vm82, %v84, %v81
    %vm86 = vcmp.eq.s32.totalorder %v57, 7
    %s87 = sld [smem:[#allocation2 + $0x7]]
    %v88 = vstv %s87
    %v89 = vsel %vm86, %v88, %v85
    %vm90 = vcmp.eq.s32.totalorder %v57, 8
    %s91 = sld [smem:[#allocation2 + $0x8]]
    %v92 = vstv %s91
    %v93 = vsel %vm90, %v92, %v89
    %vm94 = vcmp.eq.s32.totalorder %v57, 9
    %s95 = sld [smem:[#allocation2 + $0x9]]
    %v96 = vstv %s95
    %v97 = vsel %vm94, %v96, %v93
    %vm98 = vcmp.eq.s32.totalorder %v57, 10
    %s99 = sld [smem:[#allocation2 + $0xa]]
    %v100 = vstv %s99
    %v101 = vsel %vm98, %v100, %v97
    %vm102 = vcmp.eq.s32.totalorder %v57, 11
    %s103 = sld [smem:[#allocation2 + $0xb]]
    %v104 = vstv %s103
    %v105 = vsel %vm102, %v104, %v101
    %vm106 = vcmp.eq.s32.totalorder %v57, 12
    %s107 = sld [smem:[#allocation2 + $0xc]]
    %v108 = vstv %s107
    %v109 = vsel %vm106, %v108, %v105
    %vm110 = vcmp.eq.s32.totalorder %v57, 13
    %s111 = sld [smem:[#allocation2 + $0xd]]
    %v112 = vstv %s111
    %v113 = vsel %vm110, %v112, %v109
    %vm114 = vcmp.eq.s32.totalorder %v57, 14
    %s115 = sld [smem:[#allocation2 + $0xe]]
    %v116 = vstv %s115
    %v117 = vsel %vm114, %v116, %v113
    %vm118 = vcmp.eq.s32.totalorder %v57, 15
    %s119 = sld [smem:[#allocation2 + $0xf]]
    %v120 = vstv %s119
    %v121 = vsel %vm118, %v120, %v117
    %vm122 = vcmp.lt.f32.partialorder %v56, %v121
    %v123 = vsel %vm122, 1, 0
    %v124 = vsub.s32 1, %v123
    %125 = vst [vmem:[#allocation9] sm:$0xff] %v124
    %s126 = scalar_lea.vmem [#allocation9], 8
    %127 = vst [vmem:[%s126] sm:$0xff] %v123
    // Predicated region
    $region26: #{tpu_custom_call.1} parent=1 // pred_check
      _
    $region27: #{tpu_custom_call.1} parent=1 // pred_check_branch
      %129 = sbr.rel (0) target = $region29
    $region28: #{tpu_custom_call.1} parent=1 // pred_region
      %131 = vsyncadd [#allocation4], 0
      %s132 = sshll.u32 [#allocation9], 4
      %s133 = int_to_ptr.vmem [resolvable:$true] %s132
      %s134 = sshll.u32 %s3, 4
      %s135 = int_to_ptr.hbm [resolvable:$true] %s134
      %140 = dma.vmem_to_hbm [thread:$0]  %s133, 256, %s135, [#allocation4], 128, 128, 8
    $region29: #{tpu_custom_call.1} parent=1 // pred_fallthru
      _
    // Predicated region
    $region30: #{tpu_custom_call.1} parent=1 // pred_check
      _
    $region31: #{tpu_custom_call.1} parent=1 // pred_check_branch
      %142 = sbr.rel (0) target = $region33
    $region32: #{tpu_custom_call.1} parent=1 // pred_region
      %144 = dma.done [#allocation4], 256
    $region33: #{tpu_custom_call.1} parent=1 // pred_fallthru
      _
    %145 = vsyncpa [#allocation3], 1
    %146 = vsyncpa [#allocation8], 1
    %147 = vsyncpa [#allocation4], 1
    %148 = vsyncpa [#allocation5], 1

</llo_original>
